<compile_context>
chip_gen: v5e
topology: v5e:2x2
jax: 0.10.0
libtpu: 0.0.40
codegen_flags: <defaults>
</compile_context>

<pallas_src>
import math
from typing import NamedTuple

import numpy as np

import jax
import jax.numpy as jnp
from jax.experimental import pallas as pl
from jax.experimental.pallas import tpu as pltpu

LANE = 128     # last dim of every block is a multiple of this
SUBLANE = 8    # f32 sublane width
TB_CAP = 512   # target batch-tile rows (tile sweeps: 512+ ~85% of HBM roofline)


def _round_up(x, m):
    return ((x + m - 1) // m) * m


# ----------------------------------------------------------------------------
# Kernel: full 4-layer (Linear + ReLU) MLP.  One grid step = one batch tile.
# All feature dims are lane-padded in the wrapper, so every store is unmasked
# and every matmul fills full MXU columns.
# ----------------------------------------------------------------------------
def mlp_kernel(x_ref, w1_ref, w2_ref, w3_ref, w4_ref, b_ref, o_ref):
    hid = w1_ref.shape[1]
    out = w4_ref.shape[1]

    h = jnp.dot(x_ref[...], w1_ref[...], preferred_element_type=jnp.float32)
    h = jnp.maximum(h + b_ref[0:1, :hid], 0.0)

    h = jnp.dot(h.astype(jnp.bfloat16), w2_ref[...],
                preferred_element_type=jnp.float32)
    h = jnp.maximum(h + b_ref[1:2, :hid], 0.0)

    h = jnp.dot(h.astype(jnp.bfloat16), w3_ref[...],
                preferred_element_type=jnp.float32)
    h = jnp.maximum(h + b_ref[2:3, :hid], 0.0)

    h = jnp.dot(h.astype(jnp.bfloat16), w4_ref[...],
                preferred_element_type=jnp.float32)
    h = jnp.maximum(h + b_ref[3:4, :out], 0.0)  # reference ReLUs the output layer too

    o_ref[...] = h.astype(o_ref.dtype)


# ----------------------------------------------------------------------------
# Parameters
# ----------------------------------------------------------------------------
class PreparedParams(NamedTuple):
    w1: jax.Array        # (in_pad,  hid_pad) bf16
    w2: jax.Array        # (hid_pad, hid_pad) bf16
    w3: jax.Array        # (hid_pad, hid_pad) bf16
    w4: jax.Array        # (hid_pad, out_pad) bf16
    bias: jax.Array      # (8, max(hid_pad, out_pad)) f32, rows 0..3 = b1..b4
    input_dim: int
    hidden_dim: int
    output_dim: int


def make_params(key, input_dim, hidden_dim, output_dim):
    """Deterministic nn.Linear-style params; weights stored transposed to
    [in_features, out_features]."""
    def linear(key, din, dout):
        kw, kb = jax.random.split(key)
        bound = 1.0 / math.sqrt(din)
        w = jax.random.uniform(kw, (din, dout), jnp.float32, -bound, bound)
        b = jax.random.uniform(kb, (dout,), jnp.float32, -bound, bound)
        return w, b

    k1, k2, k3, k4 = jax.random.split(key, 4)
    w1, b1 = linear(k1, input_dim, hidden_dim)
    w2, b2 = linear(k2, hidden_dim, hidden_dim)
    w3, b3 = linear(k3, hidden_dim, hidden_dim)
    w4, b4 = linear(k4, hidden_dim, output_dim)
    return (w1, b1, w2, b2, w3, b3, w4, b4)


def prepare_params(params):
    """One-time preprocessing (call once, reuse every forward):
    pad weights to 128-lane multiples, cast to bf16, pack biases into one
    f32 slab.  Hoists all O(hidden^2) pad/convert HBM traffic out of the
    per-call path."""
    w1, b1, w2, b2, w3, b3, w4, b4 = params
    input_dim, hidden_dim = w1.shape
    output_dim = w4.shape[1]

    in_pad = _round_up(input_dim, LANE)
    hid_pad = _round_up(hidden_dim, LANE)
    out_pad = _round_up(output_dim, LANE)
    bias_w = max(hid_pad, out_pad)

    def pad2(a, r, c):
        return jnp.pad(a, ((0, r - a.shape[0]), (0, c - a.shape[1])))

    w1_p = pad2(w1, in_pad, hid_pad).astype(jnp.bfloat16)
    w2_p = pad2(w2, hid_pad, hid_pad).astype(jnp.bfloat16)
    w3_p = pad2(w3, hid_pad, hid_pad).astype(jnp.bfloat16)
    w4_p = pad2(w4, hid_pad, out_pad).astype(jnp.bfloat16)

    bias = jnp.zeros((SUBLANE, bias_w), jnp.float32)
    bias = bias.at[0, :hidden_dim].set(b1)
    bias = bias.at[1, :hidden_dim].set(b2)
    bias = bias.at[2, :hidden_dim].set(b3)
    bias = bias.at[3, :output_dim].set(b4)

    return PreparedParams(w1_p, w2_p, w3_p, w4_p, bias,
                          input_dim, hidden_dim, output_dim)


def _vmem_capacity_bytes():
    try:
        return int(pltpu.get_tpu_info().vmem_capacity_bytes)
    except Exception:
        return 64 << 20  # conservative default (v7x per-TensorCore VMEM)


def _mlp_reference(x, p: PreparedParams):
    """Plain-XLA path with identical math (bf16 operands, f32 accumulate)."""
    in_pad, hid_pad = p.w1.shape
    out_pad = p.w4.shape[1]
    xp = jnp.pad(x, ((0, 0), (0, in_pad - x.shape[1]))).astype(jnp.bfloat16)

    def lin_relu(h, w, brow, width):
        y = jnp.dot(h.astype(jnp.bfloat16), w, preferred_element_type=jnp.float32)
        return jnp.maximum(y + brow[:width], 0.0)

    h = lin_relu(xp, p.w1, p.bias[0], hid_pad)
    h = lin_relu(h, p.w2, p.bias[1], hid_pad)
    h = lin_relu(h, p.w3, p.bias[2], hid_pad)
    h = lin_relu(h, p.w4, p.bias[3], out_pad)
    return h[:, :p.output_dim]


# ----------------------------------------------------------------------------
# Forward
# ----------------------------------------------------------------------------
def neural_network_forward(x, t, prepared: PreparedParams, *,
                           out_dtype=jnp.float32):
    # The reference forward computes `t = self.time_embed(t)` but never uses
    # the result for the output -> dead code, not launched here.
    del t
    p = prepared
    n = x.shape[0]
    in_pad, hid_pad = p.w1.shape
    out_pad = p.w4.shape[1]
    bias_w = p.bias.shape[1]

    # ---- Batch tiling ------------------------------------------------------
    # Target TB_CAP-row tiles with minimal padding waste, and >=2 grid steps
    # whenever the batch allows so v7x's second TensorCore gets sharded work.
    n8 = _round_up(max(n, 1), SUBLANE)
    num_tiles = pl.cdiv(n8, TB_CAP)
    if num_tiles == 1 and n8 >= 2 * SUBLANE:
        num_tiles = 2
    tb = _round_up(pl.cdiv(n8, num_tiles), SUBLANE)
    n_pad = tb * num_tiles
    grid = (num_tiles,)

    # ---- VMEM accounting / portability guard --------------------------------
    out_itemsize = np.dtype(out_dtype).itemsize
    weight_bytes = (in_pad * hid_pad + 2 * hid_pad * hid_pad
                    + hid_pad * out_pad) * 2                    # bf16, 1x buffered
    bias_bytes = SUBLANE * bias_w * 4
    io_bytes = 2 * tb * in_pad * 2 + 2 * tb * out_pad * out_itemsize  # 2x buffered streams
    interm_bytes = 2 * tb * max(hid_pad, out_pad) * 4           # f32 intermediates
    vmem_cap = _vmem_capacity_bytes()
    footprint = weight_bytes + bias_bytes + io_bytes + interm_bytes + (2 << 20)

    if footprint > int(0.9 * vmem_cap):
        # TODO(synk): replace with a K/N-tiled Pallas variant (extra grid axis
        # over layers 2/3) once hidden_dim no longer fits VMEM-resident.
        return _mlp_reference(x, p).astype(out_dtype)

    vmem_budget = min(int(footprint + (4 << 20)), vmem_cap)

    # Only x is padded/cast per call.
    x_p = jnp.pad(x, ((0, n_pad - n), (0, in_pad - x.shape[1]))).astype(jnp.bfloat16)

    flops = 2 * n_pad * (in_pad * hid_pad + 2 * hid_pad * hid_pad
                         + hid_pad * out_pad)
    bytes_accessed = (weight_bytes + bias_bytes + n_pad * in_pad * 2
                      + n_pad * out_pad * out_itemsize)
    cost = pl.CostEstimate(flops=flops, transcendentals=0,
                           bytes_accessed=bytes_accessed)

    def run(single_buffer_weights):
        def resident(shape):
            nd = len(shape)
            idx = lambda i, _nd=nd: (0,) * _nd
            if single_buffer_weights:
                # Constant index_map -> nothing to double-buffer; halves the
                # resident-weight VMEM footprint (matters on v7x's 64 MiB).
                return pl.BlockSpec(shape, idx, pipeline_mode=pl.Buffered(1))
            return pl.BlockSpec(shape, idx)

        grid_spec = pltpu.PrefetchScalarGridSpec(
            num_scalar_prefetch=0,
            grid=grid,
            in_specs=[
                pl.BlockSpec((tb, in_pad), lambda i: (i, 0)),   # x tile, streamed
                resident(p.w1.shape),
                resident(p.w2.shape),
                resident(p.w3.shape),
                resident(p.w4.shape),
                resident(p.bias.shape),
            ],
            out_specs=pl.BlockSpec((tb, out_pad), lambda i: (i, 0)),
        )
        return pl.pallas_call(
            mlp_kernel,
            out_shape=jax.ShapeDtypeStruct((n_pad, out_pad), out_dtype),
            grid_spec=grid_spec,
            compiler_params=pltpu.CompilerParams(
                dimension_semantics=("parallel",),
                vmem_limit_bytes=vmem_budget),
            cost_estimate=cost,
        )(x_p, p.w1, p.w2, p.w3, p.w4, p.bias)

    try:
        out_padded = run(single_buffer_weights=True)
    except Exception:
        # Older jax without BlockSpec pipeline_mode support: fall back to the
        # default double-buffered resident weights (correct, just more VMEM).
        out_padded = run(single_buffer_weights=False)

    return out_padded[:n, :p.output_dim]


if __name__ == "__main__":
    # Small shapes consistent with the module's forward.
    batch = 8
    input_dim = 16
    hidden_dim = 32
    output_dim = 16
    steps = 10

    key = jax.random.PRNGKey(0)
    kx, kt, kp = jax.random.split(key, 3)

    x = jax.random.normal(kx, (batch, input_dim), jnp.float32)
    t = jax.random.randint(kt, (batch,), 0, steps, jnp.int32)

    raw_params = make_params(kp, input_dim, hidden_dim, output_dim)
    prepared = prepare_params(raw_params)          # one-time; reused per call

    out = neural_network_forward(x, t, prepared)   # default f32 output
    jax.block_until_ready(out)

    ref = _mlp_reference(x, prepared)              # same bf16/f32-acc math

    assert out.shape == (batch, output_dim)
    assert jnp.allclose(out, ref, atol=1e-3, rtol=1e-3), \
        float(jnp.max(jnp.abs(out - ref)))

    print("KERNEL_OK")
</pallas_src>

<mosaic_0001>
module attributes {stable_mosaic.version = 11 : i64} {
  func.func @mlp_kernel(%arg0: i32, %arg1: memref<8x128xbf16, #tpu.memory_space<vmem>>, %arg2: memref<128x128xbf16, #tpu.memory_space<vmem>>, %arg3: memref<128x128xbf16, #tpu.memory_space<vmem>>, %arg4: memref<128x128xbf16, #tpu.memory_space<vmem>>, %arg5: memref<128x128xbf16, #tpu.memory_space<vmem>>, %arg6: memref<8x128xf32, #tpu.memory_space<vmem>>, %arg7: memref<8x128xf32, #tpu.memory_space<vmem>>) attributes {dimension_semantics = [#tpu.dimension_semantics<parallel>], iteration_bounds = array<i64: 1>, scalar_prefetch = 0 : i64, scratch_operands = 0 : i64, tpu.core_type = #tpu.core_type<tc>, window_params = [{transform_indices = @transform_0, window_bounds = array<i64: 8, 128>}, {pipeline_mode = #tpu.pipeline_mode<synchronous>, transform_indices = @transform_1, window_bounds = array<i64: 128, 128>}, {pipeline_mode = #tpu.pipeline_mode<synchronous>, transform_indices = @transform_2, window_bounds = array<i64: 128, 128>}, {pipeline_mode = #tpu.pipeline_mode<synchronous>, transform_indices = @transform_3, window_bounds = array<i64: 128, 128>}, {pipeline_mode = #tpu.pipeline_mode<synchronous>, transform_indices = @transform_4, window_bounds = array<i64: 128, 128>}, {pipeline_mode = #tpu.pipeline_mode<synchronous>, transform_indices = @transform_5, window_bounds = array<i64: 8, 128>}, {transform_indices = @transform_6, window_bounds = array<i64: 8, 128>}]} {
    %c0 = arith.constant 0 : index
    %c0_0 = arith.constant 0 : index
    %0 = vector.load %arg1[%c0, %c0_0] : memref<8x128xbf16, #tpu.memory_space<vmem>>, vector<8x128xbf16>
    %c0_1 = arith.constant 0 : index
    %c0_2 = arith.constant 0 : index
    %1 = vector.load %arg2[%c0_1, %c0_2] : memref<128x128xbf16, #tpu.memory_space<vmem>>, vector<128x128xbf16>
    %cst = arith.constant dense<0.000000e+00> : vector<8x128xf32>
    %2 = tpu.matmul %0, %1, %cst {dimension_numbers = #tpu.dot_dimension_numbers<[1], [0], [0], [1], [0, 0, 1, 1], [], []>} : vector<8x128xbf16>, vector<128x128xbf16>, vector<8x128xf32> -> vector<8x128xf32>
    %c0_3 = arith.constant 0 : index
    %c0_4 = arith.constant 0 : index
    %3 = vector.load %arg6[%c0_3, %c0_4] : memref<8x128xf32, #tpu.memory_space<vmem>>, vector<1x128xf32>
    %4 = vector.broadcast %3 : vector<1x128xf32> to vector<8x128xf32>
    %5 = arith.addf %2, %4 : vector<8x128xf32>
    %cst_5 = arith.constant 0.000000e+00 : f32
    %6 = vector.broadcast %cst_5 : f32 to vector<8x128xf32>
    %7 = arith.maximumf %5, %6 : vector<8x128xf32>
    %8 = arith.truncf %7 : vector<8x128xf32> to vector<8x128xbf16>
    %c0_6 = arith.constant 0 : index
    %c0_7 = arith.constant 0 : index
    %9 = vector.load %arg3[%c0_6, %c0_7] : memref<128x128xbf16, #tpu.memory_space<vmem>>, vector<128x128xbf16>
    %cst_8 = arith.constant dense<0.000000e+00> : vector<8x128xf32>
    %10 = tpu.matmul %8, %9, %cst_8 {dimension_numbers = #tpu.dot_dimension_numbers<[1], [0], [0], [1], [0, 0, 1, 1], [], []>} : vector<8x128xbf16>, vector<128x128xbf16>, vector<8x128xf32> -> vector<8x128xf32>
    %c1 = arith.constant 1 : index
    %c0_9 = arith.constant 0 : index
    %11 = vector.load %arg6[%c1, %c0_9] : memref<8x128xf32, #tpu.memory_space<vmem>>, vector<1x128xf32>
    %12 = vector.broadcast %11 : vector<1x128xf32> to vector<8x128xf32>
    %13 = arith.addf %10, %12 : vector<8x128xf32>
    %cst_10 = arith.constant 0.000000e+00 : f32
    %14 = vector.broadcast %cst_10 : f32 to vector<8x128xf32>
    %15 = arith.maximumf %13, %14 : vector<8x128xf32>
    %16 = arith.truncf %15 : vector<8x128xf32> to vector<8x128xbf16>
    %c0_11 = arith.constant 0 : index
    %c0_12 = arith.constant 0 : index
    %17 = vector.load %arg4[%c0_11, %c0_12] : memref<128x128xbf16, #tpu.memory_space<vmem>>, vector<128x128xbf16>
    %cst_13 = arith.constant dense<0.000000e+00> : vector<8x128xf32>
    %18 = tpu.matmul %16, %17, %cst_13 {dimension_numbers = #tpu.dot_dimension_numbers<[1], [0], [0], [1], [0, 0, 1, 1], [], []>} : vector<8x128xbf16>, vector<128x128xbf16>, vector<8x128xf32> -> vector<8x128xf32>
    %c2 = arith.constant 2 : index
    %c0_14 = arith.constant 0 : index
    %19 = vector.load %arg6[%c2, %c0_14] : memref<8x128xf32, #tpu.memory_space<vmem>>, vector<1x128xf32>
    %20 = vector.broadcast %19 : vector<1x128xf32> to vector<8x128xf32>
    %21 = arith.addf %18, %20 : vector<8x128xf32>
    %cst_15 = arith.constant 0.000000e+00 : f32
    %22 = vector.broadcast %cst_15 : f32 to vector<8x128xf32>
    %23 = arith.maximumf %21, %22 : vector<8x128xf32>
    %24 = arith.truncf %23 : vector<8x128xf32> to vector<8x128xbf16>
    %c0_16 = arith.constant 0 : index
    %c0_17 = arith.constant 0 : index
    %25 = vector.load %arg5[%c0_16, %c0_17] : memref<128x128xbf16, #tpu.memory_space<vmem>>, vector<128x128xbf16>
    %cst_18 = arith.constant dense<0.000000e+00> : vector<8x128xf32>
    %26 = tpu.matmul %24, %25, %cst_18 {dimension_numbers = #tpu.dot_dimension_numbers<[1], [0], [0], [1], [0, 0, 1, 1], [], []>} : vector<8x128xbf16>, vector<128x128xbf16>, vector<8x128xf32> -> vector<8x128xf32>
    %c3 = arith.constant 3 : index
    %c0_19 = arith.constant 0 : index
    %27 = vector.load %arg6[%c3, %c0_19] : memref<8x128xf32, #tpu.memory_space<vmem>>, vector<1x128xf32>
    %28 = vector.broadcast %27 : vector<1x128xf32> to vector<8x128xf32>
    %29 = arith.addf %26, %28 : vector<8x128xf32>
    %cst_20 = arith.constant 0.000000e+00 : f32
    %30 = vector.broadcast %cst_20 : f32 to vector<8x128xf32>
    %31 = arith.maximumf %29, %30 : vector<8x128xf32>
    %c0_21 = arith.constant 0 : index
    %c0_22 = arith.constant 0 : index
    %32 = vector.load %arg7[%c0_21, %c0_22] : memref<8x128xf32, #tpu.memory_space<vmem>>, vector<8x128xf32>
    tpu.vector_store %arg7[%c0_21, %c0_22], %31 {strides = array<i32>} : memref<8x128xf32, #tpu.memory_space<vmem>>, vector<8x128xf32>,
    return
  }
  func.func @transform_0(%arg0: i32) -> (i32, i32) {
    %c0_i32 = arith.constant 0 : i32
    %c0_i32_0 = arith.constant 0 : i32
    return %arg0, %c0_i32 : i32, i32
  }
  func.func @transform_1(%arg0: i32) -> (i32, i32) {
    %c0_i32 = arith.constant 0 : i32
    %c0_i32_0 = arith.constant 0 : i32
    %c0_i32_1 = arith.constant 0 : i32
    return %c0_i32, %c0_i32_0 : i32, i32
  }
  func.func @transform_2(%arg0: i32) -> (i32, i32) {
    %c0_i32 = arith.constant 0 : i32
    %c0_i32_0 = arith.constant 0 : i32
    %c0_i32_1 = arith.constant 0 : i32
    return %c0_i32, %c0_i32_0 : i32, i32
  }
  func.func @transform_3(%arg0: i32) -> (i32, i32) {
    %c0_i32 = arith.constant 0 : i32
    %c0_i32_0 = arith.constant 0 : i32
    %c0_i32_1 = arith.constant 0 : i32
    return %c0_i32, %c0_i32_0 : i32, i32
  }
  func.func @transform_4(%arg0: i32) -> (i32, i32) {
    %c0_i32 = arith.constant 0 : i32
    %c0_i32_0 = arith.constant 0 : i32
    %c0_i32_1 = arith.constant 0 : i32
    return %c0_i32, %c0_i32_0 : i32, i32
  }
  func.func @transform_5(%arg0: i32) -> (i32, i32) {
    %c0_i32 = arith.constant 0 : i32
    %c0_i32_0 = arith.constant 0 : i32
    %c0_i32_1 = arith.constant 0 : i32
    return %c0_i32, %c0_i32_0 : i32, i32
  }
  func.func @transform_6(%arg0: i32) -> (i32, i32) {
    %c0_i32 = arith.constant 0 : i32
    %c0_i32_0 = arith.constant 0 : i32
    return %arg0, %c0_i32 : i32, i32
  }
}

module attributes {stable_mosaic.version = 11 : i64} {
  func.func @mlp_kernel(%arg0: i32, %arg1: memref<8x128xbf16, #tpu.memory_space<vmem>>, %arg2: memref<128x128xbf16, #tpu.memory_space<vmem>>, %arg3: memref<128x128xbf16, #tpu.memory_space<vmem>>, %arg4: memref<128x128xbf16, #tpu.memory_space<vmem>>, %arg5: memref<128x128xbf16, #tpu.memory_space<vmem>>, %arg6: memref<8x128xf32, #tpu.memory_space<vmem>>, %arg7: memref<8x128xf32, #tpu.memory_space<vmem>>) attributes {dimension_semantics = [#tpu.dimension_semantics<parallel>], iteration_bounds = array<i64: 1>, scalar_prefetch = 0 : i64, scratch_operands = 0 : i64, tpu.core_type = #tpu.core_type<tc>, window_params = [{transform_indices = @transform_0, window_bounds = array<i64: 8, 128>}, {pipeline_mode = #tpu.pipeline_mode<synchronous>, transform_indices = @transform_1, window_bounds = array<i64: 128, 128>}, {pipeline_mode = #tpu.pipeline_mode<synchronous>, transform_indices = @transform_2, window_bounds = array<i64: 128, 128>}, {pipeline_mode = #tpu.pipeline_mode<synchronous>, transform_indices = @transform_3, window_bounds = array<i64: 128, 128>}, {pipeline_mode = #tpu.pipeline_mode<synchronous>, transform_indices = @transform_4, window_bounds = array<i64: 128, 128>}, {pipeline_mode = #tpu.pipeline_mode<synchronous>, transform_indices = @transform_5, window_bounds = array<i64: 8, 128>}, {transform_indices = @transform_6, window_bounds = array<i64: 8, 128>}]} {
    %c0 = arith.constant 0 : index
    %c0_0 = arith.constant 0 : index
    %0 = vector.load %arg1[%c0, %c0_0] : memref<8x128xbf16, #tpu.memory_space<vmem>>, vector<8x128xbf16>
    %c0_1 = arith.constant 0 : index
    %c0_2 = arith.constant 0 : index
    %1 = vector.load %arg2[%c0_1, %c0_2] : memref<128x128xbf16, #tpu.memory_space<vmem>>, vector<128x128xbf16>
    %cst = arith.constant dense<0.000000e+00> : vector<8x128xf32>
    %2 = tpu.matmul %0, %1, %cst {dimension_numbers = #tpu.dot_dimension_numbers<[1], [0], [0], [1], [0, 0, 1, 1], [], []>} : vector<8x128xbf16>, vector<128x128xbf16>, vector<8x128xf32> -> vector<8x128xf32>
    %c0_3 = arith.constant 0 : index
    %c0_4 = arith.constant 0 : index
    %3 = vector.load %arg6[%c0_3, %c0_4] : memref<8x128xf32, #tpu.memory_space<vmem>>, vector<1x128xf32>
    %4 = vector.broadcast %3 : vector<1x128xf32> to vector<8x128xf32>
    %5 = arith.addf %2, %4 : vector<8x128xf32>
    %cst_5 = arith.constant 0.000000e+00 : f32
    %6 = vector.broadcast %cst_5 : f32 to vector<8x128xf32>
    %7 = arith.maximumf %5, %6 : vector<8x128xf32>
    %8 = arith.truncf %7 : vector<8x128xf32> to vector<8x128xbf16>
    %c0_6 = arith.constant 0 : index
    %c0_7 = arith.constant 0 : index
    %9 = vector.load %arg3[%c0_6, %c0_7] : memref<128x128xbf16, #tpu.memory_space<vmem>>, vector<128x128xbf16>
    %cst_8 = arith.constant dense<0.000000e+00> : vector<8x128xf32>
    %10 = tpu.matmul %8, %9, %cst_8 {dimension_numbers = #tpu.dot_dimension_numbers<[1], [0], [0], [1], [0, 0, 1, 1], [], []>} : vector<8x128xbf16>, vector<128x128xbf16>, vector<8x128xf32> -> vector<8x128xf32>
    %c1 = arith.constant 1 : index
    %c0_9 = arith.constant 0 : index
    %11 = vector.load %arg6[%c1, %c0_9] : memref<8x128xf32, #tpu.memory_space<vmem>>, vector<1x128xf32>
    %12 = vector.broadcast %11 : vector<1x128xf32> to vector<8x128xf32>
    %13 = arith.addf %10, %12 : vector<8x128xf32>
    %cst_10 = arith.constant 0.000000e+00 : f32
    %14 = vector.broadcast %cst_10 : f32 to vector<8x128xf32>
    %15 = arith.maximumf %13, %14 : vector<8x128xf32>
    %16 = arith.truncf %15 : vector<8x128xf32> to vector<8x128xbf16>
    %c0_11 = arith.constant 0 : index
    %c0_12 = arith.constant 0 : index
    %17 = vector.load %arg4[%c0_11, %c0_12] : memref<128x128xbf16, #tpu.memory_space<vmem>>, vector<128x128xbf16>
    %cst_13 = arith.constant dense<0.000000e+00> : vector<8x128xf32>
    %18 = tpu.matmul %16, %17, %cst_13 {dimension_numbers = #tpu.dot_dimension_numbers<[1], [0], [0], [1], [0, 0, 1, 1], [], []>} : vector<8x128xbf16>, vector<128x128xbf16>, vector<8x128xf32> -> vector<8x128xf32>
    %c2 = arith.constant 2 : index
    %c0_14 = arith.constant 0 : index
    %19 = vector.load %arg6[%c2, %c0_14] : memref<8x128xf32, #tpu.memory_space<vmem>>, vector<1x128xf32>
    %20 = vector.broadcast %19 : vector<1x128xf32> to vector<8x128xf32>
    %21 = arith.addf %18, %20 : vector<8x128xf32>
    %cst_15 = arith.constant 0.000000e+00 : f32
    %22 = vector.broadcast %cst_15 : f32 to vector<8x128xf32>
    %23 = arith.maximumf %21, %22 : vector<8x128xf32>
    %24 = arith.truncf %23 : vector<8x128xf32> to vector<8x128xbf16>
    %c0_16 = arith.constant 0 : index
    %c0_17 = arith.constant 0 : index
    %25 = vector.load %arg5[%c0_16, %c0_17] : memref<128x128xbf16, #tpu.memory_space<vmem>>, vector<128x128xbf16>
    %cst_18 = arith.constant dense<0.000000e+00> : vector<8x128xf32>
    %26 = tpu.matmul %24, %25, %cst_18 {dimension_numbers = #tpu.dot_dimension_numbers<[1], [0], [0], [1], [0, 0, 1, 1], [], []>} : vector<8x128xbf16>, vector<128x128xbf16>, vector<8x128xf32> -> vector<8x128xf32>
    %c3 = arith.constant 3 : index
    %c0_19 = arith.constant 0 : index
    %27 = vector.load %arg6[%c3, %c0_19] : memref<8x128xf32, #tpu.memory_space<vmem>>, vector<1x128xf32>
    %28 = vector.broadcast %27 : vector<1x128xf32> to vector<8x128xf32>
    %29 = arith.addf %26, %28 : vector<8x128xf32>
    %cst_20 = arith.constant 0.000000e+00 : f32
    %30 = vector.broadcast %cst_20 : f32 to vector<8x128xf32>
    %31 = arith.maximumf %29, %30 : vector<8x128xf32>
    %c0_21 = arith.constant 0 : index
    %c0_22 = arith.constant 0 : index
    %32 = vector.load %arg7[%c0_21, %c0_22] : memref<8x128xf32, #tpu.memory_space<vmem>>, vector<8x128xf32>
    tpu.vector_store %arg7[%c0_21, %c0_22], %31 {strides = array<i32>} : memref<8x128xf32, #tpu.memory_space<vmem>>, vector<8x128xf32>,
    return
  }
  func.func @transform_0(%arg0: i32) -> (i32, i32) {
    %c0_i32 = arith.constant 0 : i32
    %c0_i32_0 = arith.constant 0 : i32
    return %arg0, %c0_i32 : i32, i32
  }
  func.func @transform_1(%arg0: i32) -> (i32, i32) {
    %c0_i32 = arith.constant 0 : i32
    %c0_i32_0 = arith.constant 0 : i32
    %c0_i32_1 = arith.constant 0 : i32
    return %c0_i32, %c0_i32_0 : i32, i32
  }
  func.func @transform_2(%arg0: i32) -> (i32, i32) {
    %c0_i32 = arith.constant 0 : i32
    %c0_i32_0 = arith.constant 0 : i32
    %c0_i32_1 = arith.constant 0 : i32
    return %c0_i32, %c0_i32_0 : i32, i32
  }
  func.func @transform_3(%arg0: i32) -> (i32, i32) {
    %c0_i32 = arith.constant 0 : i32
    %c0_i32_0 = arith.constant 0 : i32
    %c0_i32_1 = arith.constant 0 : i32
    return %c0_i32, %c0_i32_0 : i32, i32
  }
  func.func @transform_4(%arg0: i32) -> (i32, i32) {
    %c0_i32 = arith.constant 0 : i32
    %c0_i32_0 = arith.constant 0 : i32
    %c0_i32_1 = arith.constant 0 : i32
    return %c0_i32, %c0_i32_0 : i32, i32
  }
  func.func @transform_5(%arg0: i32) -> (i32, i32) {
    %c0_i32 = arith.constant 0 : i32
    %c0_i32_0 = arith.constant 0 : i32
    %c0_i32_1 = arith.constant 0 : i32
    return %c0_i32, %c0_i32_0 : i32, i32
  }
  func.func @transform_6(%arg0: i32) -> (i32, i32) {
    %c0_i32 = arith.constant 0 : i32
    %c0_i32_0 = arith.constant 0 : i32
    return %arg0, %c0_i32 : i32, i32
  }
}

</mosaic_0001>

<llo_original>
// kernel: tpu_custom_call.1
$region0: #{tpu_custom_call.1}
  #allocation0 [shape = 'u32[]', space=smem, size = 0x4, offset = 0x4, fixed_abs, tag = 'smem constant byte address 0x4 - core index']
  #allocation1 [shape = 'u32[72,128]{1,0:T(1,128)}', space=vmem, size = 0x9000, scoped, tag = 'internal scratch']
  %s0 = inlined_call_operand.hbm [shape: bf16[8,128], index: 0, kind: input, shape index: {}]
  %s1 = inlined_call_operand.hbm [shape: bf16[128,128], index: 1, kind: input, shape index: {}]
  %s2 = inlined_call_operand.hbm [shape: bf16[128,128], index: 2, kind: input, shape index: {}]
  %s3 = inlined_call_operand.hbm [shape: bf16[128,128], index: 3, kind: input, shape index: {}]
  %s4 = inlined_call_operand.hbm [shape: bf16[128,128], index: 4, kind: input, shape index: {}]
  %s5 = inlined_call_operand.hbm [shape: f32[8,128], index: 5, kind: input, shape index: {}]
  %s6 = inlined_call_operand.hbm [shape: f32[8,128], index: 6, kind: output, shape index: {}]
  %s7 = sld [smem:[#allocation0]]
  $region58: #{tpu_custom_call.1} parent=0
    _
  %s9 = ssub.s32 1, %s7
  %s10 = scalar_select 0, %s9, %s7
  $region1: #{tpu_custom_call.1} parent=0
    #allocation2 [shape = 'u8[2048]{0}', space=vmem, size = 0x800, scoped, tag = 'input window, operand 0, single buffered']
    #allocation3 [shape = 's32[1]{0}', space=sflag, size = 0x4, scoped, tag = 'scoped memory for tpu_custom_call.1']
    #allocation4 [shape = 's32[1]{0}', space=sflag, size = 0x4, scoped, tag = 'scoped memory for tpu_custom_call.1']
    #allocation5 [shape = 'u8[32768]{0}', space=vmem, size = 0x8000, scoped, tag = 'input window, operand 1, single buffered']
    #allocation6 [shape = 's32[1]{0}', space=sflag, size = 0x4, scoped, tag = 'scoped memory for tpu_custom_call.1']
    #allocation7 [shape = 'u8[32768]{0}', space=vmem, size = 0x8000, scoped, tag = 'input window, operand 2, single buffered']
    #allocation8 [shape = 'u8[32768]{0}', space=vmem, size = 0x8000, scoped, tag = 'input window, operand 3, single buffered']
    #allocation9 [shape = 's32[1]{0}', space=sflag, size = 0x4, scoped, tag = 'scoped memory for tpu_custom_call.1']
    #allocation10 [shape = 'u8[32768]{0}', space=vmem, size = 0x8000, scoped, tag = 'input window, operand 4, single buffered']
    #allocation11 [shape = 'u8[4096]{0}', space=vmem, size = 0x1000, scoped, tag = 'input window, operand 5, single buffered']
    #allocation12 [shape = 's32[1]{0}', space=sflag, size = 0x4, scoped, tag = 'scoped memory for tpu_custom_call.1']
    #allocation13 [shape = 'u8[4096]{0}', space=vmem, size = 0x1000, scoped, tag = 'output window, operand 0, single buffered']
    %11 = vsyncpa [#allocation3], 0
    %12 = vsyncpa [#allocation6], 0
    %13 = vsyncpa [#allocation9], 0
    %14 = vsyncpa [#allocation12], 0
    %15 = vsyncpa [#allocation4], 0
    // Predicated region
    $region2: #{tpu_custom_call.1} parent=1 // pred_check
      _
    $region3: #{tpu_custom_call.1} parent=1 // pred_check_branch
      %17 = sbr.rel (0) target = $region5
    $region4: #{tpu_custom_call.1} parent=1 // pred_region
      %19 = vsyncadd [#allocation3], 0
      %s21 = sshll.u32 %s0, 4
      %s22 = int_to_ptr.hbm [resolvable:$true] %s21
      %s23 = sshll.u32 [#allocation2], 4
      %s24 = int_to_ptr.vmem [resolvable:$true] %s23
      %26 = dma.hbm_to_vmem [thread:$0]  %s22, 64, %s24, [#allocation3]
    $region5: #{tpu_custom_call.1} parent=1 // pred_fallthru
      _
    // Predicated region
    $region6: #{tpu_custom_call.1} parent=1 // pred_check
      _
    $region7: #{tpu_custom_call.1} parent=1 // pred_check_branch
      %28 = sbr.rel (0) target = $region9
    $region8: #{tpu_custom_call.1} parent=1 // pred_region
      %30 = vsyncadd [#allocation6], 0
      %s31 = sshll.u32 %s1, 4
      %s32 = int_to_ptr.hbm [resolvable:$true] %s31
      %s33 = sshll.u32 [#allocation5], 4
      %s34 = int_to_ptr.vmem [resolvable:$true] %s33
      %39 = dma.hbm_to_vmem [thread:$0]  %s32, 1024, %s34, [#allocation6], 64, 64, 4
    $region9: #{tpu_custom_call.1} parent=1 // pred_fallthru
      _
    // Predicated region
    $region10: #{tpu_custom_call.1} parent=1 // pred_check
      _
    $region11: #{tpu_custom_call.1} parent=1 // pred_check_branch
      %41 = sbr.rel (0) target = $region13
    $region12: #{tpu_custom_call.1} parent=1 // pred_region
      %43 = vsyncadd [#allocation6], 0
      %s44 = sshll.u32 %s2, 4
      %s45 = int_to_ptr.hbm [resolvable:$true] %s44
      %s46 = sshll.u32 [#allocation7], 4
      %s47 = int_to_ptr.vmem [resolvable:$true] %s46
      %52 = dma.hbm_to_vmem [thread:$0]  %s45, 1024, %s47, [#allocation6], 64, 64, 4
    $region13: #{tpu_custom_call.1} parent=1 // pred_fallthru
      _
    // Predicated region
    $region14: #{tpu_custom_call.1} parent=1 // pred_check
      _
    $region15: #{tpu_custom_call.1} parent=1 // pred_check_branch
      %54 = sbr.rel (0) target = $region17
    $region16: #{tpu_custom_call.1} parent=1 // pred_region
      %56 = vsyncadd [#allocation9], 0
      %s57 = sshll.u32 %s3, 4
      %s58 = int_to_ptr.hbm [resolvable:$true] %s57
      %s59 = sshll.u32 [#allocation8], 4
      %s60 = int_to_ptr.vmem [resolvable:$true] %s59
      %65 = dma.hbm_to_vmem [thread:$0]  %s58, 1024, %s60, [#allocation9], 64, 64, 4
    $region17: #{tpu_custom_call.1} parent=1 // pred_fallthru
      _
    // Predicated region
    $region18: #{tpu_custom_call.1} parent=1 // pred_check
      _
    $region19: #{tpu_custom_call.1} parent=1 // pred_check_branch
      %67 = sbr.rel (0) target = $region21
    $region20: #{tpu_custom_call.1} parent=1 // pred_region
      %69 = vsyncadd [#allocation9], 0
      %s70 = sshll.u32 %s4, 4
      %s71 = int_to_ptr.hbm [resolvable:$true] %s70
      %s72 = sshll.u32 [#allocation10], 4
      %s73 = int_to_ptr.vmem [resolvable:$true] %s72
      %78 = dma.hbm_to_vmem [thread:$0]  %s71, 1024, %s73, [#allocation9], 64, 64, 4
    $region21: #{tpu_custom_call.1} parent=1 // pred_fallthru
      _
    // Predicated region
    $region22: #{tpu_custom_call.1} parent=1 // pred_check
      _
    $region23: #{tpu_custom_call.1} parent=1 // pred_check_branch
      %80 = sbr.rel (0) target = $region25
    $region24: #{tpu_custom_call.1} parent=1 // pred_region
      %82 = vsyncadd [#allocation12], 0
      %s84 = sshll.u32 %s5, 4
      %s85 = int_to_ptr.hbm [resolvable:$true] %s84
      %s86 = sshll.u32 [#allocation11], 4
      %s87 = int_to_ptr.vmem [resolvable:$true] %s86
      %89 = dma.hbm_to_vmem [thread:$0]  %s85, 128, %s87, [#allocation12]
    $region25: #{tpu_custom_call.1} parent=1 // pred_fallthru
      _
    // Predicated region
    $region26: #{tpu_custom_call.1} parent=1 // pred_check
      _
    $region27: #{tpu_custom_call.1} parent=1 // pred_check_branch
      %91 = sbr.rel (0) target = $region29
    $region28: #{tpu_custom_call.1} parent=1 // pred_region
      %93 = dma.done [#allocation3], 64
    $region29: #{tpu_custom_call.1} parent=1 // pred_fallthru
      _
    // Predicated region
    $region30: #{tpu_custom_call.1} parent=1 // pred_check
      _
    $region31: #{tpu_custom_call.1} parent=1 // pred_check_branch
      %95 = sbr.rel (0) target = $region33
    $region32: #{tpu_custom_call.1} parent=1 // pred_region
      %97 = dma.done [#allocation6], 1024
    $region33: #{tpu_custom_call.1} parent=1 // pred_fallthru
      _
    // Predicated region
    $region34: #{tpu_custom_call.1} parent=1 // pred_check
      _
    $region35: #{tpu_custom_call.1} parent=1 // pred_check_branch
      %99 = sbr.rel (0) target = $region37
    $region36: #{tpu_custom_call.1} parent=1 // pred_region
      %101 = dma.done [#allocation6], 1024
    $region37: #{tpu_custom_call.1} parent=1 // pred_fallthru
      _
    // Predicated region
    $region38: #{tpu_custom_call.1} parent=1 // pred_check
      _
    $region39: #{tpu_custom_call.1} parent=1 // pred_check_branch
      %103 = sbr.rel (0) target = $region41
    $region40: #{tpu_custom_call.1} parent=1 // pred_region
      %105 = dma.done [#allocation9], 1024
    $region41: #{tpu_custom_call.1} parent=1 // pred_fallthru
      _
    // Predicated region
    $region42: #{tpu_custom_call.1} parent=1 // pred_check
      _
    $region43: #{tpu_custom_call.1} parent=1 // pred_check_branch
      %107 = sbr.rel (0) target = $region45
    $region44: #{tpu_custom_call.1} parent=1 // pred_region
      %109 = dma.done [#allocation9], 1024
    $region45: #{tpu_custom_call.1} parent=1 // pred_fallthru
      _
    // Predicated region
    $region46: #{tpu_custom_call.1} parent=1 // pred_check
      _
    $region47: #{tpu_custom_call.1} parent=1 // pred_check_branch
      %111 = sbr.rel (0) target = $region49
    $region48: #{tpu_custom_call.1} parent=1 // pred_region
      %113 = dma.done [#allocation12], 128
    $region49: #{tpu_custom_call.1} parent=1 // pred_fallthru
      _
    %v114 = vld [vmem:[#allocation2] sm:$0xf]
    %v115 = vld [vmem:[#allocation5] sm:$0xf]
    %v116 = vld [vmem:[#allocation5 + $0x4] sm:$0xf]
    %v117 = vld [vmem:[#allocation5 + $0x8] sm:$0xf]
    %v118 = vld [vmem:[#allocation5 + $0xc] sm:$0xf]
    %v119 = vld [vmem:[#allocation5 + $0x10] sm:$0xf]
    %v120 = vld [vmem:[#allocation5 + $0x14] sm:$0xf]
    %v121 = vld [vmem:[#allocation5 + $0x18] sm:$0xf]
    %v122 = vld [vmem:[#allocation5 + $0x1c] sm:$0xf]
    %v123 = vld [vmem:[#allocation5 + $0x20] sm:$0xf]
    %v124 = vld [vmem:[#allocation5 + $0x24] sm:$0xf]
    %v125 = vld [vmem:[#allocation5 + $0x28] sm:$0xf]
    %v126 = vld [vmem:[#allocation5 + $0x2c] sm:$0xf]
    %v127 = vld [vmem:[#allocation5 + $0x30] sm:$0xf]
    %v128 = vld [vmem:[#allocation5 + $0x34] sm:$0xf]
    %v129 = vld [vmem:[#allocation5 + $0x38] sm:$0xf]
    %v130 = vld [vmem:[#allocation5 + $0x3c] sm:$0xf]
    %v131 = vld [vmem:[#allocation11] sm:$0x1]
    %v132 = vperm.slane %v131, 0
    %v149 = vunpack.c.l.b16 %v115
    %v150 = vunpack.c.l.b16 %v116
    %v151 = vunpack.c.l.b16 %v117
    %v152 = vunpack.c.l.b16 %v118
    %v153 = vunpack.c.l.b16 %v119
    %v154 = vunpack.c.l.b16 %v120
    %v155 = vunpack.c.l.b16 %v121
    %v156 = vunpack.c.l.b16 %v122
    %v157 = vunpack.c.l.b16 %v123
    %v158 = vunpack.c.l.b16 %v124
    %v159 = vunpack.c.l.b16 %v125
    %v160 = vunpack.c.l.b16 %v126
    %v161 = vunpack.c.l.b16 %v127
    %v162 = vunpack.c.l.b16 %v128
    %v163 = vunpack.c.l.b16 %v129
    %v164 = vunpack.c.l.b16 %v130
    %v165 = vpack.c.b16 %v150, %v149
    %v166 = vpack.c.b16 %v152, %v151
    %v167 = vpack.c.b16 %v154, %v153
    %v168 = vpack.c.b16 %v156, %v155
    %v169 = vpack.c.b16 %v158, %v157
    %v170 = vpack.c.b16 %v160, %v159
    %v171 = vpack.c.b16 %v162, %v161
    %v172 = vpack.c.b16 %v164, %v163
    %181 = vmatpush.bf16.msra.mxu0 %v172
    %182 = vmatpush.bf16.msra.mxu0 %v171
    %183 = vmatpush.bf16.msra.mxu0 %v170
    %184 = vmatpush.bf16.msra.mxu0 %v169
    %185 = vmatpush.bf16.msra.mxu0 %v168
    %186 = vmatpush.bf16.msra.mxu0 %v167
    %187 = vmatpush.bf16.msra.mxu0 %v166
    %188 = vmatpush.bf16.msra.mxu0 %v165
    %189 = vmatmul.bf16.gmra.mxu0 %v114
    %v190 = vpop.f32.mrf.mxu0
    %v191 = vadd.f32 %v132, %v190
    %v192 = vpop.f32.mrf.mxu0
    %193 = vdwg.mxu0
    %v194 = vmax.f32 %v191, 0.0
    %v195 = vpack.c.bf16 %v194, %v194
    %v196 = vld [vmem:[#allocation7] sm:$0xf]
    %v197 = vld [vmem:[#allocation7 + $0x4] sm:$0xf]
    %v198 = vld [vmem:[#allocation7 + $0x8] sm:$0xf]
    %v199 = vld [vmem:[#allocation7 + $0xc] sm:$0xf]
    %v200 = vld [vmem:[#allocation7 + $0x10] sm:$0xf]
    %v201 = vld [vmem:[#allocation7 + $0x14] sm:$0xf]
    %v202 = vld [vmem:[#allocation7 + $0x18] sm:$0xf]
    %v203 = vld [vmem:[#allocation7 + $0x1c] sm:$0xf]
    %v204 = vld [vmem:[#allocation7 + $0x20] sm:$0xf]
    %v205 = vld [vmem:[#allocation7 + $0x24] sm:$0xf]
    %v206 = vld [vmem:[#allocation7 + $0x28] sm:$0xf]
    %v207 = vld [vmem:[#allocation7 + $0x2c] sm:$0xf]
    %v208 = vld [vmem:[#allocation7 + $0x30] sm:$0xf]
    %v209 = vld [vmem:[#allocation7 + $0x34] sm:$0xf]
    %v210 = vld [vmem:[#allocation7 + $0x38] sm:$0xf]
    %v211 = vld [vmem:[#allocation7 + $0x3c] sm:$0xf]
    %v212 = vld [vmem:[#allocation11 + $0x1] sm:$0x1]
    %v213 = vperm.slane %v212, 0
    %v230 = vunpack.c.l.b16 %v196
    %v231 = vunpack.c.l.b16 %v197
    %v232 = vunpack.c.l.b16 %v198
    %v233 = vunpack.c.l.b16 %v199
    %v234 = vunpack.c.l.b16 %v200
    %v235 = vunpack.c.l.b16 %v201
    %v236 = vunpack.c.l.b16 %v202
    %v237 = vunpack.c.l.b16 %v203
    %v238 = vunpack.c.l.b16 %v204
    %v239 = vunpack.c.l.b16 %v205
    %v240 = vunpack.c.l.b16 %v206
    %v241 = vunpack.c.l.b16 %v207
    %v242 = vunpack.c.l.b16 %v208
    %v243 = vunpack.c.l.b16 %v209
    %v244 = vunpack.c.l.b16 %v210
    %v245 = vunpack.c.l.b16 %v211
    %v246 = vpack.c.b16 %v231, %v230
    %v247 = vpack.c.b16 %v233, %v232
    %v248 = vpack.c.b16 %v235, %v234
    %v249 = vpack.c.b16 %v237, %v236
    %v250 = vpack.c.b16 %v239, %v238
    %v251 = vpack.c.b16 %v241, %v240
    %v252 = vpack.c.b16 %v243, %v242
    %v253 = vpack.c.b16 %v245, %v244
    %262 = vmatpush.bf16.msra.mxu0 %v253
    %263 = vmatpush.bf16.msra.mxu0 %v252
    %264 = vmatpush.bf16.msra.mxu0 %v251
    %265 = vmatpush.bf16.msra.mxu0 %v250
    %266 = vmatpush.bf16.msra.mxu0 %v249
    %267 = vmatpush.bf16.msra.mxu0 %v248
    %268 = vmatpush.bf16.msra.mxu0 %v247
    %269 = vmatpush.bf16.msra.mxu0 %v246
    %270 = vmatmul.bf16.gmra.mxu0 %v195
    %v271 = vpop.f32.mrf.mxu0
    %v272 = vadd.f32 %v213, %v271
    %v273 = vpop.f32.mrf.mxu0
    %274 = vdwg.mxu0
    %v275 = vmax.f32 %v272, 0.0
    %v276 = vpack.c.bf16 %v275, %v275
    %v277 = vld [vmem:[#allocation8] sm:$0xf]
    %v278 = vld [vmem:[#allocation8 + $0x4] sm:$0xf]
    %v279 = vld [vmem:[#allocation8 + $0x8] sm:$0xf]
    %v280 = vld [vmem:[#allocation8 + $0xc] sm:$0xf]
    %v281 = vld [vmem:[#allocation8 + $0x10] sm:$0xf]
    %v282 = vld [vmem:[#allocation8 + $0x14] sm:$0xf]
    %v283 = vld [vmem:[#allocation8 + $0x18] sm:$0xf]
    %v284 = vld [vmem:[#allocation8 + $0x1c] sm:$0xf]
    %v285 = vld [vmem:[#allocation8 + $0x20] sm:$0xf]
    %v286 = vld [vmem:[#allocation8 + $0x24] sm:$0xf]
    %v287 = vld [vmem:[#allocation8 + $0x28] sm:$0xf]
    %v288 = vld [vmem:[#allocation8 + $0x2c] sm:$0xf]
    %v289 = vld [vmem:[#allocation8 + $0x30] sm:$0xf]
    %v290 = vld [vmem:[#allocation8 + $0x34] sm:$0xf]
    %v291 = vld [vmem:[#allocation8 + $0x38] sm:$0xf]
    %v292 = vld [vmem:[#allocation8 + $0x3c] sm:$0xf]
    %v293 = vld [vmem:[#allocation11 + $0x2] sm:$0x1]
    %v294 = vperm.slane %v293, 0
    %v311 = vunpack.c.l.b16 %v277
    %v312 = vunpack.c.l.b16 %v278
    %v313 = vunpack.c.l.b16 %v279
    %v314 = vunpack.c.l.b16 %v280
    %v315 = vunpack.c.l.b16 %v281
    %v316 = vunpack.c.l.b16 %v282
    %v317 = vunpack.c.l.b16 %v283
    %v318 = vunpack.c.l.b16 %v284
    %v319 = vunpack.c.l.b16 %v285
    %v320 = vunpack.c.l.b16 %v286
    %v321 = vunpack.c.l.b16 %v287
    %v322 = vunpack.c.l.b16 %v288
    %v323 = vunpack.c.l.b16 %v289
    %v324 = vunpack.c.l.b16 %v290
    %v325 = vunpack.c.l.b16 %v291
    %v326 = vunpack.c.l.b16 %v292
    %v327 = vpack.c.b16 %v312, %v311
    %v328 = vpack.c.b16 %v314, %v313
    %v329 = vpack.c.b16 %v316, %v315
    %v330 = vpack.c.b16 %v318, %v317
    %v331 = vpack.c.b16 %v320, %v319
    %v332 = vpack.c.b16 %v322, %v321
    %v333 = vpack.c.b16 %v324, %v323
    %v334 = vpack.c.b16 %v326, %v325
    %343 = vmatpush.bf16.msra.mxu0 %v334
    %344 = vmatpush.bf16.msra.mxu0 %v333
    %345 = vmatpush.bf16.msra.mxu0 %v332
    %346 = vmatpush.bf16.msra.mxu0 %v331
    %347 = vmatpush.bf16.msra.mxu0 %v330
    %348 = vmatpush.bf16.msra.mxu0 %v329
    %349 = vmatpush.bf16.msra.mxu0 %v328
    %350 = vmatpush.bf16.msra.mxu0 %v327
    %351 = vmatmul.bf16.gmra.mxu0 %v276
    %v352 = vpop.f32.mrf.mxu0
    %v353 = vadd.f32 %v294, %v352
    %v354 = vpop.f32.mrf.mxu0
    %355 = vdwg.mxu0
    %v356 = vmax.f32 %v353, 0.0
    %v357 = vpack.c.bf16 %v356, %v356
    %v358 = vld [vmem:[#allocation10] sm:$0xf]
    %v359 = vld [vmem:[#allocation10 + $0x4] sm:$0xf]
    %v360 = vld [vmem:[#allocation10 + $0x8] sm:$0xf]
    %v361 = vld [vmem:[#allocation10 + $0xc] sm:$0xf]
    %v362 = vld [vmem:[#allocation10 + $0x10] sm:$0xf]
    %v363 = vld [vmem:[#allocation10 + $0x14] sm:$0xf]
    %v364 = vld [vmem:[#allocation10 + $0x18] sm:$0xf]
    %v365 = vld [vmem:[#allocation10 + $0x1c] sm:$0xf]
    %v366 = vld [vmem:[#allocation10 + $0x20] sm:$0xf]
    %v367 = vld [vmem:[#allocation10 + $0x24] sm:$0xf]
    %v368 = vld [vmem:[#allocation10 + $0x28] sm:$0xf]
    %v369 = vld [vmem:[#allocation10 + $0x2c] sm:$0xf]
    %v370 = vld [vmem:[#allocation10 + $0x30] sm:$0xf]
    %v371 = vld [vmem:[#allocation10 + $0x34] sm:$0xf]
    %v372 = vld [vmem:[#allocation10 + $0x38] sm:$0xf]
    %v373 = vld [vmem:[#allocation10 + $0x3c] sm:$0xf]
    %v374 = vld [vmem:[#allocation11 + $0x3] sm:$0x1]
    %v375 = vperm.slane %v374, 0
    %v392 = vunpack.c.l.b16 %v358
    %v393 = vunpack.c.l.b16 %v359
    %v394 = vunpack.c.l.b16 %v360
    %v395 = vunpack.c.l.b16 %v361
    %v396 = vunpack.c.l.b16 %v362
    %v397 = vunpack.c.l.b16 %v363
    %v398 = vunpack.c.l.b16 %v364
    %v399 = vunpack.c.l.b16 %v365
    %v400 = vunpack.c.l.b16 %v366
    %v401 = vunpack.c.l.b16 %v367
    %v402 = vunpack.c.l.b16 %v368
    %v403 = vunpack.c.l.b16 %v369
    %v404 = vunpack.c.l.b16 %v370
    %v405 = vunpack.c.l.b16 %v371
    %v406 = vunpack.c.l.b16 %v372
    %v407 = vunpack.c.l.b16 %v373
    %v408 = vpack.c.b16 %v393, %v392
    %v409 = vpack.c.b16 %v395, %v394
    %v410 = vpack.c.b16 %v397, %v396
    %v411 = vpack.c.b16 %v399, %v398
    %v412 = vpack.c.b16 %v401, %v400
    %v413 = vpack.c.b16 %v403, %v402
    %v414 = vpack.c.b16 %v405, %v404
    %v415 = vpack.c.b16 %v407, %v406
    %424 = vmatpush.bf16.msra.mxu0 %v415
    %425 = vmatpush.bf16.msra.mxu0 %v414
    %426 = vmatpush.bf16.msra.mxu0 %v413
    %427 = vmatpush.bf16.msra.mxu0 %v412
    %428 = vmatpush.bf16.msra.mxu0 %v411
    %429 = vmatpush.bf16.msra.mxu0 %v410
    %430 = vmatpush.bf16.msra.mxu0 %v409
    %431 = vmatpush.bf16.msra.mxu0 %v408
    %432 = vmatmul.bf16.gmra.mxu0 %v357
    %v433 = vpop.f32.mrf.mxu0
    %v434 = vadd.f32 %v375, %v433
    %v435 = vpop.f32.mrf.mxu0
    %436 = vdwg.mxu0
    %v437 = vmax.f32 %v434, 0.0
    %438 = vst [vmem:[#allocation13] sm:$0xff] %v437
    // Predicated region
    $region50: #{tpu_custom_call.1} parent=1 // pred_check
      _
    $region51: #{tpu_custom_call.1} parent=1 // pred_check_branch
      %440 = sbr.rel (0) target = $region53
    $region52: #{tpu_custom_call.1} parent=1 // pred_region
      %442 = vsyncadd [#allocation4], 0
      %s444 = sshll.u32 [#allocation13], 4
      %s445 = int_to_ptr.vmem [resolvable:$true] %s444
      %s446 = sshll.u32 %s6, 4
      %s447 = int_to_ptr.hbm [resolvable:$true] %s446
      %449 = dma.vmem_to_hbm [thread:$0]  %s445, 128, %s447, [#allocation4]
    $region53: #{tpu_custom_call.1} parent=1 // pred_fallthru
      _
    // Predicated region
    $region54: #{tpu_custom_call.1} parent=1 // pred_check
      _
    $region55: #{tpu_custom_call.1} parent=1 // pred_check_branch
      %451 = sbr.rel (0) target = $region57
    $region56: #{tpu_custom_call.1} parent=1 // pred_region
      %453 = dma.done [#allocation4], 128
    $region57: #{tpu_custom_call.1} parent=1 // pred_fallthru
      _
    %454 = vsyncpa [#allocation3], 1
    %455 = vsyncpa [#allocation6], 1
    %456 = vsyncpa [#allocation9], 1
    %457 = vsyncpa [#allocation12], 1
    %458 = vsyncpa [#allocation4], 1

// kernel: tpu_custom_call.1
$region0: #{tpu_custom_call.1}
  #allocation0 [shape = 'u32[]', space=smem, size = 0x4, offset = 0x4, fixed_abs, tag = 'smem constant byte address 0x4 - core index']
  #allocation1 [shape = 'u32[72,128]{1,0:T(1,128)}', space=vmem, size = 0x9000, scoped, tag = 'internal scratch']
  %s0 = inlined_call_operand.hbm [shape: bf16[8,128], index: 0, kind: input, shape index: {}]
  %s1 = inlined_call_operand.hbm [shape: bf16[128,128], index: 1, kind: input, shape index: {}]
  %s2 = inlined_call_operand.hbm [shape: bf16[128,128], index: 2, kind: input, shape index: {}]
  %s3 = inlined_call_operand.hbm [shape: bf16[128,128], index: 3, kind: input, shape index: {}]
  %s4 = inlined_call_operand.hbm [shape: bf16[128,128], index: 4, kind: input, shape index: {}]
  %s5 = inlined_call_operand.hbm [shape: f32[8,128], index: 5, kind: input, shape index: {}]
  %s6 = inlined_call_operand.hbm [shape: f32[8,128], index: 6, kind: output, shape index: {}]
  %s7 = sld [smem:[#allocation0]]
  $region58: #{tpu_custom_call.1} parent=0
    _
  %s9 = ssub.s32 1, %s7
  %s10 = scalar_select 0, %s9, %s7
  $region1: #{tpu_custom_call.1} parent=0
    #allocation2 [shape = 'u8[2048]{0}', space=vmem, size = 0x800, scoped, tag = 'input window, operand 0, single buffered']
    #allocation3 [shape = 's32[1]{0}', space=sflag, size = 0x4, scoped, tag = 'scoped memory for tpu_custom_call.1']
    #allocation4 [shape = 's32[1]{0}', space=sflag, size = 0x4, scoped, tag = 'scoped memory for tpu_custom_call.1']
    #allocation5 [shape = 'u8[32768]{0}', space=vmem, size = 0x8000, scoped, tag = 'input window, operand 1, single buffered']
    #allocation6 [shape = 's32[1]{0}', space=sflag, size = 0x4, scoped, tag = 'scoped memory for tpu_custom_call.1']
    #allocation7 [shape = 'u8[32768]{0}', space=vmem, size = 0x8000, scoped, tag = 'input window, operand 2, single buffered']
    #allocation8 [shape = 'u8[32768]{0}', space=vmem, size = 0x8000, scoped, tag = 'input window, operand 3, single buffered']
    #allocation9 [shape = 's32[1]{0}', space=sflag, size = 0x4, scoped, tag = 'scoped memory for tpu_custom_call.1']
    #allocation10 [shape = 'u8[32768]{0}', space=vmem, size = 0x8000, scoped, tag = 'input window, operand 4, single buffered']
    #allocation11 [shape = 'u8[4096]{0}', space=vmem, size = 0x1000, scoped, tag = 'input window, operand 5, single buffered']
    #allocation12 [shape = 's32[1]{0}', space=sflag, size = 0x4, scoped, tag = 'scoped memory for tpu_custom_call.1']
    #allocation13 [shape = 'u8[4096]{0}', space=vmem, size = 0x1000, scoped, tag = 'output window, operand 0, single buffered']
    %11 = vsyncpa [#allocation3], 0
    %12 = vsyncpa [#allocation6], 0
    %13 = vsyncpa [#allocation9], 0
    %14 = vsyncpa [#allocation12], 0
    %15 = vsyncpa [#allocation4], 0
    // Predicated region
    $region2: #{tpu_custom_call.1} parent=1 // pred_check
      _
    $region3: #{tpu_custom_call.1} parent=1 // pred_check_branch
      %17 = sbr.rel (0) target = $region5
    $region4: #{tpu_custom_call.1} parent=1 // pred_region
      %19 = vsyncadd [#allocation3], 0
      %s21 = sshll.u32 %s0, 4
      %s22 = int_to_ptr.hbm [resolvable:$true] %s21
      %s23 = sshll.u32 [#allocation2], 4
      %s24 = int_to_ptr.vmem [resolvable:$true] %s23
      %26 = dma.hbm_to_vmem [thread:$0]  %s22, 64, %s24, [#allocation3]
    $region5: #{tpu_custom_call.1} parent=1 // pred_fallthru
      _
    // Predicated region
    $region6: #{tpu_custom_call.1} parent=1 // pred_check
      _
    $region7: #{tpu_custom_call.1} parent=1 // pred_check_branch
      %28 = sbr.rel (0) target = $region9
    $region8: #{tpu_custom_call.1} parent=1 // pred_region
      %30 = vsyncadd [#allocation6], 0
      %s31 = sshll.u32 %s1, 4
      %s32 = int_to_ptr.hbm [resolvable:$true] %s31
      %s33 = sshll.u32 [#allocation5], 4
      %s34 = int_to_ptr.vmem [resolvable:$true] %s33
      %39 = dma.hbm_to_vmem [thread:$0]  %s32, 1024, %s34, [#allocation6], 64, 64, 4
    $region9: #{tpu_custom_call.1} parent=1 // pred_fallthru
      _
    // Predicated region
    $region10: #{tpu_custom_call.1} parent=1 // pred_check
      _
    $region11: #{tpu_custom_call.1} parent=1 // pred_check_branch
      %41 = sbr.rel (0) target = $region13
    $region12: #{tpu_custom_call.1} parent=1 // pred_region
      %43 = vsyncadd [#allocation6], 0
      %s44 = sshll.u32 %s2, 4
      %s45 = int_to_ptr.hbm [resolvable:$true] %s44
      %s46 = sshll.u32 [#allocation7], 4
      %s47 = int_to_ptr.vmem [resolvable:$true] %s46
      %52 = dma.hbm_to_vmem [thread:$0]  %s45, 1024, %s47, [#allocation6], 64, 64, 4
    $region13: #{tpu_custom_call.1} parent=1 // pred_fallthru
      _
    // Predicated region
    $region14: #{tpu_custom_call.1} parent=1 // pred_check
      _
    $region15: #{tpu_custom_call.1} parent=1 // pred_check_branch
      %54 = sbr.rel (0) target = $region17
    $region16: #{tpu_custom_call.1} parent=1 // pred_region
      %56 = vsyncadd [#allocation9], 0
      %s57 = sshll.u32 %s3, 4
      %s58 = int_to_ptr.hbm [resolvable:$true] %s57
      %s59 = sshll.u32 [#allocation8], 4
      %s60 = int_to_ptr.vmem [resolvable:$true] %s59
      %65 = dma.hbm_to_vmem [thread:$0]  %s58, 1024, %s60, [#allocation9], 64, 64, 4
    $region17: #{tpu_custom_call.1} parent=1 // pred_fallthru
      _
    // Predicated region
    $region18: #{tpu_custom_call.1} parent=1 // pred_check
      _
    $region19: #{tpu_custom_call.1} parent=1 // pred_check_branch
      %67 = sbr.rel (0) target = $region21
    $region20: #{tpu_custom_call.1} parent=1 // pred_region
      %69 = vsyncadd [#allocation9], 0
      %s70 = sshll.u32 %s4, 4
      %s71 = int_to_ptr.hbm [resolvable:$true] %s70
      %s72 = sshll.u32 [#allocation10], 4
      %s73 = int_to_ptr.vmem [resolvable:$true] %s72
      %78 = dma.hbm_to_vmem [thread:$0]  %s71, 1024, %s73, [#allocation9], 64, 64, 4
    $region21: #{tpu_custom_call.1} parent=1 // pred_fallthru
      _
    // Predicated region
    $region22: #{tpu_custom_call.1} parent=1 // pred_check
      _
    $region23: #{tpu_custom_call.1} parent=1 // pred_check_branch
      %80 = sbr.rel (0) target = $region25
    $region24: #{tpu_custom_call.1} parent=1 // pred_region
      %82 = vsyncadd [#allocation12], 0
      %s84 = sshll.u32 %s5, 4
      %s85 = int_to_ptr.hbm [resolvable:$true] %s84
      %s86 = sshll.u32 [#allocation11], 4
      %s87 = int_to_ptr.vmem [resolvable:$true] %s86
      %89 = dma.hbm_to_vmem [thread:$0]  %s85, 128, %s87, [#allocation12]
    $region25: #{tpu_custom_call.1} parent=1 // pred_fallthru
      _
    // Predicated region
    $region26: #{tpu_custom_call.1} parent=1 // pred_check
      _
    $region27: #{tpu_custom_call.1} parent=1 // pred_check_branch
      %91 = sbr.rel (0) target = $region29
    $region28: #{tpu_custom_call.1} parent=1 // pred_region
      %93 = dma.done [#allocation3], 64
    $region29: #{tpu_custom_call.1} parent=1 // pred_fallthru
      _
    // Predicated region
    $region30: #{tpu_custom_call.1} parent=1 // pred_check
      _
    $region31: #{tpu_custom_call.1} parent=1 // pred_check_branch
      %95 = sbr.rel (0) target = $region33
    $region32: #{tpu_custom_call.1} parent=1 // pred_region
      %97 = dma.done [#allocation6], 1024
    $region33: #{tpu_custom_call.1} parent=1 // pred_fallthru
      _
    // Predicated region
    $region34: #{tpu_custom_call.1} parent=1 // pred_check
      _
    $region35: #{tpu_custom_call.1} parent=1 // pred_check_branch
      %99 = sbr.rel (0) target = $region37
    $region36: #{tpu_custom_call.1} parent=1 // pred_region
      %101 = dma.done [#allocation6], 1024
    $region37: #{tpu_custom_call.1} parent=1 // pred_fallthru
      _
    // Predicated region
    $region38: #{tpu_custom_call.1} parent=1 // pred_check
      _
    $region39: #{tpu_custom_call.1} parent=1 // pred_check_branch
      %103 = sbr.rel (0) target = $region41
    $region40: #{tpu_custom_call.1} parent=1 // pred_region
      %105 = dma.done [#allocation9], 1024
    $region41: #{tpu_custom_call.1} parent=1 // pred_fallthru
      _
    // Predicated region
    $region42: #{tpu_custom_call.1} parent=1 // pred_check
      _
    $region43: #{tpu_custom_call.1} parent=1 // pred_check_branch
      %107 = sbr.rel (0) target = $region45
    $region44: #{tpu_custom_call.1} parent=1 // pred_region
      %109 = dma.done [#allocation9], 1024
    $region45: #{tpu_custom_call.1} parent=1 // pred_fallthru
      _
    // Predicated region
    $region46: #{tpu_custom_call.1} parent=1 // pred_check
      _
    $region47: #{tpu_custom_call.1} parent=1 // pred_check_branch
      %111 = sbr.rel (0) target = $region49
    $region48: #{tpu_custom_call.1} parent=1 // pred_region
      %113 = dma.done [#allocation12], 128
    $region49: #{tpu_custom_call.1} parent=1 // pred_fallthru
      _
    %v114 = vld [vmem:[#allocation2] sm:$0xf]
    %v115 = vld [vmem:[#allocation5] sm:$0xf]
    %v116 = vld [vmem:[#allocation5 + $0x4] sm:$0xf]
    %v117 = vld [vmem:[#allocation5 + $0x8] sm:$0xf]
    %v118 = vld [vmem:[#allocation5 + $0xc] sm:$0xf]
    %v119 = vld [vmem:[#allocation5 + $0x10] sm:$0xf]
    %v120 = vld [vmem:[#allocation5 + $0x14] sm:$0xf]
    %v121 = vld [vmem:[#allocation5 + $0x18] sm:$0xf]
    %v122 = vld [vmem:[#allocation5 + $0x1c] sm:$0xf]
    %v123 = vld [vmem:[#allocation5 + $0x20] sm:$0xf]
    %v124 = vld [vmem:[#allocation5 + $0x24] sm:$0xf]
    %v125 = vld [vmem:[#allocation5 + $0x28] sm:$0xf]
    %v126 = vld [vmem:[#allocation5 + $0x2c] sm:$0xf]
    %v127 = vld [vmem:[#allocation5 + $0x30] sm:$0xf]
    %v128 = vld [vmem:[#allocation5 + $0x34] sm:$0xf]
    %v129 = vld [vmem:[#allocation5 + $0x38] sm:$0xf]
    %v130 = vld [vmem:[#allocation5 + $0x3c] sm:$0xf]
    %v131 = vld [vmem:[#allocation11] sm:$0x1]
    %v132 = vperm.slane %v131, 0
    %v149 = vunpack.c.l.b16 %v115
    %v150 = vunpack.c.l.b16 %v116
    %v151 = vunpack.c.l.b16 %v117
    %v152 = vunpack.c.l.b16 %v118
    %v153 = vunpack.c.l.b16 %v119
    %v154 = vunpack.c.l.b16 %v120
    %v155 = vunpack.c.l.b16 %v121
    %v156 = vunpack.c.l.b16 %v122
    %v157 = vunpack.c.l.b16 %v123
    %v158 = vunpack.c.l.b16 %v124
    %v159 = vunpack.c.l.b16 %v125
    %v160 = vunpack.c.l.b16 %v126
    %v161 = vunpack.c.l.b16 %v127
    %v162 = vunpack.c.l.b16 %v128
    %v163 = vunpack.c.l.b16 %v129
    %v164 = vunpack.c.l.b16 %v130
    %v165 = vpack.c.b16 %v150, %v149
    %v166 = vpack.c.b16 %v152, %v151
    %v167 = vpack.c.b16 %v154, %v153
    %v168 = vpack.c.b16 %v156, %v155
    %v169 = vpack.c.b16 %v158, %v157
    %v170 = vpack.c.b16 %v160, %v159
    %v171 = vpack.c.b16 %v162, %v161
    %v172 = vpack.c.b16 %v164, %v163
    %181 = vmatpush.bf16.msra.mxu0 %v172
    %182 = vmatpush.bf16.msra.mxu0 %v171
    %183 = vmatpush.bf16.msra.mxu0 %v170
    %184 = vmatpush.bf16.msra.mxu0 %v169
    %185 = vmatpush.bf16.msra.mxu0 %v168
    %186 = vmatpush.bf16.msra.mxu0 %v167
    %187 = vmatpush.bf16.msra.mxu0 %v166
    %188 = vmatpush.bf16.msra.mxu0 %v165
    %189 = vmatmul.bf16.gmra.mxu0 %v114
    %v190 = vpop.f32.mrf.mxu0
    %v191 = vadd.f32 %v132, %v190
    %v192 = vpop.f32.mrf.mxu0
    %193 = vdwg.mxu0
    %v194 = vmax.f32 %v191, 0.0
    %v195 = vpack.c.bf16 %v194, %v194
    %v196 = vld [vmem:[#allocation7] sm:$0xf]
    %v197 = vld [vmem:[#allocation7 + $0x4] sm:$0xf]
    %v198 = vld [vmem:[#allocation7 + $0x8] sm:$0xf]
    %v199 = vld [vmem:[#allocation7 + $0xc] sm:$0xf]
    %v200 = vld [vmem:[#allocation7 + $0x10] sm:$0xf]
    %v201 = vld [vmem:[#allocation7 + $0x14] sm:$0xf]
    %v202 = vld [vmem:[#allocation7 + $0x18] sm:$0xf]
    %v203 = vld [vmem:[#allocation7 + $0x1c] sm:$0xf]
    %v204 = vld [vmem:[#allocation7 + $0x20] sm:$0xf]
    %v205 = vld [vmem:[#allocation7 + $0x24] sm:$0xf]
    %v206 = vld [vmem:[#allocation7 + $0x28] sm:$0xf]
    %v207 = vld [vmem:[#allocation7 + $0x2c] sm:$0xf]
    %v208 = vld [vmem:[#allocation7 + $0x30] sm:$0xf]
    %v209 = vld [vmem:[#allocation7 + $0x34] sm:$0xf]
    %v210 = vld [vmem:[#allocation7 + $0x38] sm:$0xf]
    %v211 = vld [vmem:[#allocation7 + $0x3c] sm:$0xf]
    %v212 = vld [vmem:[#allocation11 + $0x1] sm:$0x1]
    %v213 = vperm.slane %v212, 0
    %v230 = vunpack.c.l.b16 %v196
    %v231 = vunpack.c.l.b16 %v197
    %v232 = vunpack.c.l.b16 %v198
    %v233 = vunpack.c.l.b16 %v199
    %v234 = vunpack.c.l.b16 %v200
    %v235 = vunpack.c.l.b16 %v201
    %v236 = vunpack.c.l.b16 %v202
    %v237 = vunpack.c.l.b16 %v203
    %v238 = vunpack.c.l.b16 %v204
    %v239 = vunpack.c.l.b16 %v205
    %v240 = vunpack.c.l.b16 %v206
    %v241 = vunpack.c.l.b16 %v207
    %v242 = vunpack.c.l.b16 %v208
    %v243 = vunpack.c.l.b16 %v209
    %v244 = vunpack.c.l.b16 %v210
    %v245 = vunpack.c.l.b16 %v211
    %v246 = vpack.c.b16 %v231, %v230
    %v247 = vpack.c.b16 %v233, %v232
    %v248 = vpack.c.b16 %v235, %v234
    %v249 = vpack.c.b16 %v237, %v236
    %v250 = vpack.c.b16 %v239, %v238
    %v251 = vpack.c.b16 %v241, %v240
    %v252 = vpack.c.b16 %v243, %v242
    %v253 = vpack.c.b16 %v245, %v244
    %262 = vmatpush.bf16.msra.mxu0 %v253
    %263 = vmatpush.bf16.msra.mxu0 %v252
    %264 = vmatpush.bf16.msra.mxu0 %v251
    %265 = vmatpush.bf16.msra.mxu0 %v250
    %266 = vmatpush.bf16.msra.mxu0 %v249
    %267 = vmatpush.bf16.msra.mxu0 %v248
    %268 = vmatpush.bf16.msra.mxu0 %v247
    %269 = vmatpush.bf16.msra.mxu0 %v246
    %270 = vmatmul.bf16.gmra.mxu0 %v195
    %v271 = vpop.f32.mrf.mxu0
    %v272 = vadd.f32 %v213, %v271
    %v273 = vpop.f32.mrf.mxu0
    %274 = vdwg.mxu0
    %v275 = vmax.f32 %v272, 0.0
    %v276 = vpack.c.bf16 %v275, %v275
    %v277 = vld [vmem:[#allocation8] sm:$0xf]
    %v278 = vld [vmem:[#allocation8 + $0x4] sm:$0xf]
    %v279 = vld [vmem:[#allocation8 + $0x8] sm:$0xf]
    %v280 = vld [vmem:[#allocation8 + $0xc] sm:$0xf]
    %v281 = vld [vmem:[#allocation8 + $0x10] sm:$0xf]
    %v282 = vld [vmem:[#allocation8 + $0x14] sm:$0xf]
    %v283 = vld [vmem:[#allocation8 + $0x18] sm:$0xf]
    %v284 = vld [vmem:[#allocation8 + $0x1c] sm:$0xf]
    %v285 = vld [vmem:[#allocation8 + $0x20] sm:$0xf]
    %v286 = vld [vmem:[#allocation8 + $0x24] sm:$0xf]
    %v287 = vld [vmem:[#allocation8 + $0x28] sm:$0xf]
    %v288 = vld [vmem:[#allocation8 + $0x2c] sm:$0xf]
    %v289 = vld [vmem:[#allocation8 + $0x30] sm:$0xf]
    %v290 = vld [vmem:[#allocation8 + $0x34] sm:$0xf]
    %v291 = vld [vmem:[#allocation8 + $0x38] sm:$0xf]
    %v292 = vld [vmem:[#allocation8 + $0x3c] sm:$0xf]
    %v293 = vld [vmem:[#allocation11 + $0x2] sm:$0x1]
    %v294 = vperm.slane %v293, 0
    %v311 = vunpack.c.l.b16 %v277
    %v312 = vunpack.c.l.b16 %v278
    %v313 = vunpack.c.l.b16 %v279
    %v314 = vunpack.c.l.b16 %v280
    %v315 = vunpack.c.l.b16 %v281
    %v316 = vunpack.c.l.b16 %v282
    %v317 = vunpack.c.l.b16 %v283
    %v318 = vunpack.c.l.b16 %v284
    %v319 = vunpack.c.l.b16 %v285
    %v320 = vunpack.c.l.b16 %v286
    %v321 = vunpack.c.l.b16 %v287
    %v322 = vunpack.c.l.b16 %v288
    %v323 = vunpack.c.l.b16 %v289
    %v324 = vunpack.c.l.b16 %v290
    %v325 = vunpack.c.l.b16 %v291
    %v326 = vunpack.c.l.b16 %v292
    %v327 = vpack.c.b16 %v312, %v311
    %v328 = vpack.c.b16 %v314, %v313
    %v329 = vpack.c.b16 %v316, %v315
    %v330 = vpack.c.b16 %v318, %v317
    %v331 = vpack.c.b16 %v320, %v319
    %v332 = vpack.c.b16 %v322, %v321
    %v333 = vpack.c.b16 %v324, %v323
    %v334 = vpack.c.b16 %v326, %v325
    %343 = vmatpush.bf16.msra.mxu0 %v334
    %344 = vmatpush.bf16.msra.mxu0 %v333
    %345 = vmatpush.bf16.msra.mxu0 %v332
    %346 = vmatpush.bf16.msra.mxu0 %v331
    %347 = vmatpush.bf16.msra.mxu0 %v330
    %348 = vmatpush.bf16.msra.mxu0 %v329
    %349 = vmatpush.bf16.msra.mxu0 %v328
    %350 = vmatpush.bf16.msra.mxu0 %v327
    %351 = vmatmul.bf16.gmra.mxu0 %v276
    %v352 = vpop.f32.mrf.mxu0
    %v353 = vadd.f32 %v294, %v352
    %v354 = vpop.f32.mrf.mxu0
    %355 = vdwg.mxu0
    %v356 = vmax.f32 %v353, 0.0
    %v357 = vpack.c.bf16 %v356, %v356
    %v358 = vld [vmem:[#allocation10] sm:$0xf]
    %v359 = vld [vmem:[#allocation10 + $0x4] sm:$0xf]
    %v360 = vld [vmem:[#allocation10 + $0x8] sm:$0xf]
    %v361 = vld [vmem:[#allocation10 + $0xc] sm:$0xf]
    %v362 = vld [vmem:[#allocation10 + $0x10] sm:$0xf]
    %v363 = vld [vmem:[#allocation10 + $0x14] sm:$0xf]
    %v364 = vld [vmem:[#allocation10 + $0x18] sm:$0xf]
    %v365 = vld [vmem:[#allocation10 + $0x1c] sm:$0xf]
    %v366 = vld [vmem:[#allocation10 + $0x20] sm:$0xf]
    %v367 = vld [vmem:[#allocation10 + $0x24] sm:$0xf]
    %v368 = vld [vmem:[#allocation10 + $0x28] sm:$0xf]
    %v369 = vld [vmem:[#allocation10 + $0x2c] sm:$0xf]
    %v370 = vld [vmem:[#allocation10 + $0x30] sm:$0xf]
    %v371 = vld [vmem:[#allocation10 + $0x34] sm:$0xf]
    %v372 = vld [vmem:[#allocation10 + $0x38] sm:$0xf]
    %v373 = vld [vmem:[#allocation10 + $0x3c] sm:$0xf]
    %v374 = vld [vmem:[#allocation11 + $0x3] sm:$0x1]
    %v375 = vperm.slane %v374, 0
    %v392 = vunpack.c.l.b16 %v358
    %v393 = vunpack.c.l.b16 %v359
    %v394 = vunpack.c.l.b16 %v360
    %v395 = vunpack.c.l.b16 %v361
    %v396 = vunpack.c.l.b16 %v362
    %v397 = vunpack.c.l.b16 %v363
    %v398 = vunpack.c.l.b16 %v364
    %v399 = vunpack.c.l.b16 %v365
    %v400 = vunpack.c.l.b16 %v366
    %v401 = vunpack.c.l.b16 %v367
    %v402 = vunpack.c.l.b16 %v368
    %v403 = vunpack.c.l.b16 %v369
    %v404 = vunpack.c.l.b16 %v370
    %v405 = vunpack.c.l.b16 %v371
    %v406 = vunpack.c.l.b16 %v372
    %v407 = vunpack.c.l.b16 %v373
    %v408 = vpack.c.b16 %v393, %v392
    %v409 = vpack.c.b16 %v395, %v394
    %v410 = vpack.c.b16 %v397, %v396
    %v411 = vpack.c.b16 %v399, %v398
    %v412 = vpack.c.b16 %v401, %v400
    %v413 = vpack.c.b16 %v403, %v402
    %v414 = vpack.c.b16 %v405, %v404
    %v415 = vpack.c.b16 %v407, %v406
    %424 = vmatpush.bf16.msra.mxu0 %v415
    %425 = vmatpush.bf16.msra.mxu0 %v414
    %426 = vmatpush.bf16.msra.mxu0 %v413
    %427 = vmatpush.bf16.msra.mxu0 %v412
    %428 = vmatpush.bf16.msra.mxu0 %v411
    %429 = vmatpush.bf16.msra.mxu0 %v410
    %430 = vmatpush.bf16.msra.mxu0 %v409
    %431 = vmatpush.bf16.msra.mxu0 %v408
    %432 = vmatmul.bf16.gmra.mxu0 %v357
    %v433 = vpop.f32.mrf.mxu0
    %v434 = vadd.f32 %v375, %v433
    %v435 = vpop.f32.mrf.mxu0
    %436 = vdwg.mxu0
    %v437 = vmax.f32 %v434, 0.0
    %438 = vst [vmem:[#allocation13] sm:$0xff] %v437
    // Predicated region
    $region50: #{tpu_custom_call.1} parent=1 // pred_check
      _
    $region51: #{tpu_custom_call.1} parent=1 // pred_check_branch
      %440 = sbr.rel (0) target = $region53
    $region52: #{tpu_custom_call.1} parent=1 // pred_region
      %442 = vsyncadd [#allocation4], 0
      %s444 = sshll.u32 [#allocation13], 4
      %s445 = int_to_ptr.vmem [resolvable:$true] %s444
      %s446 = sshll.u32 %s6, 4
      %s447 = int_to_ptr.hbm [resolvable:$true] %s446
      %449 = dma.vmem_to_hbm [thread:$0]  %s445, 128, %s447, [#allocation4]
    $region53: #{tpu_custom_call.1} parent=1 // pred_fallthru
      _
    // Predicated region
    $region54: #{tpu_custom_call.1} parent=1 // pred_check
      _
    $region55: #{tpu_custom_call.1} parent=1 // pred_check_branch
      %451 = sbr.rel (0) target = $region57
    $region56: #{tpu_custom_call.1} parent=1 // pred_region
      %453 = dma.done [#allocation4], 128
    $region57: #{tpu_custom_call.1} parent=1 // pred_fallthru
      _
    %454 = vsyncpa [#allocation3], 1
    %455 = vsyncpa [#allocation6], 1
    %456 = vsyncpa [#allocation9], 1
    %457 = vsyncpa [#allocation12], 1
    %458 = vsyncpa [#allocation4], 1

</llo_original>
